<compile_context>
chip_gen: v5e
topology: v5e:2x2
jax: 0.10.0
libtpu: 0.0.40
codegen_flags: <defaults>
</compile_context>

<pallas_src>
import functools

import jax
import jax.numpy as jnp
from jax.experimental import pallas as pl
from jax.experimental.pallas import tpu as pltpu

MiB = 1024 * 1024


def _round_up(x, m):
    return ((x + m - 1) // m) * m


# --------------------------------------------------------------------------
# Kernels
# --------------------------------------------------------------------------
def _ffn_resident_kernel(x_ref, w1_ref, b1_ref, w2_ref, b2_ref, o_ref):
    # relu(relu(x @ w1 + b1) @ w2 + b2); f32 accumulation, f32 epilogue.
    h = jnp.dot(x_ref[...], w1_ref[...], preferred_element_type=jnp.float32)
    h = jnp.maximum(h + b1_ref[...], 0.0)
    y = jnp.dot(h.astype(w2_ref.dtype), w2_ref[...],
                preferred_element_type=jnp.float32)
    o_ref[...] = jnp.maximum(y + b2_ref[...], 0.0).astype(o_ref.dtype)


def _ffn_hidden_tiled_kernel(x_ref, w1_ref, b1_ref, w2_ref, b2_ref, o_ref,
                             acc_ref):
    # Hidden dim streamed in chunks over grid axis 1 (reduction, "arbitrary").
    k = pl.program_id(1)

    @pl.when(k == 0)
    def _():
        acc_ref[...] = jnp.zeros_like(acc_ref)

    h = jnp.dot(x_ref[...], w1_ref[...], preferred_element_type=jnp.float32)
    h = jnp.maximum(h + b1_ref[...], 0.0)
    acc_ref[...] += jnp.dot(h.astype(w2_ref.dtype), w2_ref[...],
                            preferred_element_type=jnp.float32)

    @pl.when(k == pl.num_programs(1) - 1)
    def _():
        o_ref[...] = jnp.maximum(acc_ref[...] + b2_ref[...],
                                 0.0).astype(o_ref.dtype)


# --------------------------------------------------------------------------
# Hardware / policy helpers
# --------------------------------------------------------------------------
@functools.lru_cache(maxsize=None)
def _tpu_vmem_and_mxu():
    """(per-core VMEM capacity bytes, MXU tile granularity for padding)."""
    vmem = None
    try:
        vmem = int(pltpu.get_tpu_info().vmem_capacity_bytes)
    except Exception:
        vmem = None
    kind = ""
    try:
        kind = jax.devices()[0].device_kind.lower()
    except Exception:
        pass
    old_gen = any(s in kind for s in ("v2", "v3", "v4", "v5"))
    mxu = 128 if old_gen else 256            # v6e / v7x: 2x256x256 MXU
    if vmem is None:
        vmem = (128 if old_gen else 64) * MiB  # conservative fallback
    return vmem, mxu


def _pad_feature(dim, mxu_gran):
    # Lane width is 128; use the full MXU width for larger dims on v6e/v7x.
    if dim <= 128:
        return 128
    return _round_up(dim, mxu_gran)


def _spec(shape, index_map, buffers=None):
    if buffers is None:
        return pl.BlockSpec(shape, index_map)
    try:
        return pl.BlockSpec(shape, index_map, pipeline_mode=pl.Buffered(buffers))
    except TypeError:
        # Older jax without pipeline_mode: fall back to default buffering.
        return pl.BlockSpec(shape, index_map)


def _pick_tm(M, in_p, out_p, compute_dtype, out_dtype, block_m):
    # Row granule: 16 for sub-32-bit operands (bf16 sublane packing), 32 for
    # 8-bit, else 8.
    gran = 8
    if jnp.dtype(compute_dtype).itemsize < 4 or jnp.dtype(out_dtype).itemsize < 4:
        gran = 16
    if jnp.dtype(compute_dtype).itemsize == 1:
        gran = 32
    if block_m is not None:
        tm = block_m
    elif max(in_p, out_p) <= 512:
        tm = 1024      # small features -> HBM/step-overhead bound: big tiles
    elif out_p >= 4096:
        tm = 256       # wide hidden -> keep tm*out_p f32 intermediate small
    else:
        tm = 512
    tm = max(gran, min(_round_up(tm, gran), _round_up(M, gran)))
    return tm


def _pick_hidden_tile(out_p, target):
    # Largest multiple of 128 that divides out_p and is <= max(target, 128).
    best, t = 128, 128
    while t <= out_p:
        if out_p % t == 0 and t <= max(target, 128):
            best = t
        t += 128
    return best


def _resident_bytes(tm, in_p, out_p, cbytes, obytes, x_buffers):
    return (2 * in_p * out_p * cbytes             # w1 + w2 (single-buffered)
            + (in_p + out_p) * 4                  # biases
            + x_buffers * tm * in_p * cbytes      # streamed x tiles
            + 2 * tm * in_p * obytes              # streamed out tiles
            + tm * out_p * 4 + tm * in_p * 4)     # f32 h / y intermediates


def _hidden_tiled_bytes(tm, th, in_p, cbytes, obytes, x_buffers):
    return (4 * in_p * th * cbytes                # w1/w2 chunks, double-buffered
            + 2 * th * 4 + in_p * 4               # biases
            + x_buffers * tm * in_p * cbytes      # x tiles
            + 2 * tm * in_p * obytes              # out tiles
            + tm * in_p * 4                       # f32 accumulator scratch
            + tm * th * 4)                        # f32 h chunk


# --------------------------------------------------------------------------
# Parameter preparation (done once, hoisted out of the per-call path)
# --------------------------------------------------------------------------
class FeedForwardParams:
    """Pre-padded, pre-cast FFN parameters (build once, reuse every call)."""

    def __init__(self, w1p, b1p, w2p, b2p, in_dim, out_dim):
        self.w1, self.b1, self.w2, self.b2 = w1p, b1p, w2p, b2p
        self.in_dim, self.out_dim = in_dim, out_dim

    @property
    def in_p(self):
        return self.w1.shape[0]

    @property
    def out_p(self):
        return self.w1.shape[1]

    @property
    def compute_dtype(self):
        return self.w1.dtype


def prepare_feedforward_params(w1, b1, w2, b2, *, compute_dtype=jnp.bfloat16):
    """Zero-pad feature dims to MXU granularity and cast weights once.

    w1: [in_dim, out_dim], b1: [out_dim], w2: [out_dim, in_dim], b2: [in_dim].
    Zero padding is exact: padded hidden columns see zero weight/bias so
    relu(0)=0 contributes nothing; padded output columns are sliced off.
    """
    in_dim, out_dim = w1.shape
    _, mxu = _tpu_vmem_and_mxu()
    in_p = _pad_feature(in_dim, mxu)
    out_p = _pad_feature(out_dim, mxu)

    w1p = jnp.zeros((in_p, out_p), compute_dtype)
    w1p = w1p.at[:in_dim, :out_dim].set(w1.astype(compute_dtype))
    w2p = jnp.zeros((out_p, in_p), compute_dtype)
    w2p = w2p.at[:out_dim, :in_dim].set(w2.astype(compute_dtype))
    b1p = jnp.zeros((1, out_p), jnp.float32)
    b1p = b1p.at[0, :out_dim].set(b1.reshape(-1).astype(jnp.float32))
    b2p = jnp.zeros((1, in_p), jnp.float32)
    b2p = b2p.at[0, :in_dim].set(b2.reshape(-1).astype(jnp.float32))
    return FeedForwardParams(w1p, b1p, w2p, b2p, in_dim, out_dim)


# --------------------------------------------------------------------------
# Forward pass
# --------------------------------------------------------------------------
def feedforward(x, params, *, block_m=None, x_buffers=2,
                force_hidden_tiling=False, hidden_block=None):
    """relu(relu(x @ w1 + b1) @ w2 + b2) for x: [M, in_dim] -> [M, in_dim]."""
    M, in_dim = x.shape
    assert in_dim == params.in_dim, "x feature dim does not match params"
    in_p, out_p = params.in_p, params.out_p
    compute_dtype = params.compute_dtype
    out_dtype = x.dtype
    cbytes = jnp.dtype(compute_dtype).itemsize
    obytes = jnp.dtype(out_dtype).itemsize

    vmem_cap, _ = _tpu_vmem_and_mxu()
    # ~56 MiB on v7x (64 MiB/TC), up to ~100 MiB on v5e/v6e (128 MiB).
    budget = max(32 * MiB, min(vmem_cap - 8 * MiB, 100 * MiB))

    tm = _pick_tm(M, in_p, out_p, compute_dtype, out_dtype, block_m)
    # Shrink tm before giving up on weight residency.
    while (_resident_bytes(tm, in_p, out_p, cbytes, obytes, x_buffers) > budget
           and tm > 256):
        tm = max(256, tm // 2)

    use_hidden_tiling = force_hidden_tiling or (
        _resident_bytes(tm, in_p, out_p, cbytes, obytes, x_buffers) > budget)

    m_p = _round_up(M, tm)

    # --- Activations: skip the HBM padding round-trip when already aligned.
    if m_p != M or in_p != in_dim:
        xp = jnp.zeros((m_p, in_p), compute_dtype)
        xp = xp.at[:M, :in_dim].set(x.astype(compute_dtype))
    elif x.dtype != compute_dtype:
        xp = x.astype(compute_dtype)
    else:
        xp = x

    flops = 4 * m_p * in_p * out_p  # two matmuls, 2 flops / MAC

    if not use_hidden_tiling:
        grid = (m_p // tm,)
        est = _resident_bytes(tm, in_p, out_p, cbytes, obytes, x_buffers)
        bytes_accessed = (m_p * in_p * (cbytes + obytes)
                          + 2 * in_p * out_p * cbytes + (in_p + out_p) * 4)
        in_specs = [
            _spec((tm, in_p), lambda i: (i, 0), buffers=x_buffers),   # x (streamed)
            _spec((in_p, out_p), lambda i: (0, 0), buffers=1),        # w1 resident
            _spec((1, out_p), lambda i: (0, 0), buffers=1),           # b1 resident
            _spec((out_p, in_p), lambda i: (0, 0), buffers=1),        # w2 resident
            _spec((1, in_p), lambda i: (0, 0), buffers=1),            # b2 resident
        ]
        out_specs = pl.BlockSpec((tm, in_p), lambda i: (i, 0))
        scratch_shapes = []
        kernel = _ffn_resident_kernel
        dims = ("parallel",)
    else:
        th = hidden_block
        if th is None:
            th = _pick_hidden_tile(out_p, 512)
            while (_hidden_tiled_bytes(tm, th, in_p, cbytes, obytes, x_buffers)
                   > budget and th > 128):
                th = _pick_hidden_tile(out_p, th // 2)
        assert out_p % th == 0, "hidden_block must divide the padded hidden dim"
        grid = (m_p // tm, out_p // th)
        est = _hidden_tiled_bytes(tm, th, in_p, cbytes, obytes, x_buffers)
        bytes_accessed = (m_p * in_p * (cbytes + obytes)
                          + (m_p // tm) * 2 * in_p * out_p * cbytes
                          + (in_p + out_p) * 4)
        in_specs = [
            _spec((tm, in_p), lambda i, k: (i, 0), buffers=x_buffers),  # x
            _spec((in_p, th), lambda i, k: (0, k)),                     # w1 chunk
            _spec((1, th), lambda i, k: (0, k)),                        # b1 chunk
            _spec((th, in_p), lambda i, k: (k, 0)),                     # w2 chunk
            _spec((1, in_p), lambda i, k: (0, 0), buffers=1),           # b2
        ]
        out_specs = pl.BlockSpec((tm, in_p), lambda i, k: (i, 0))
        scratch_shapes = [pltpu.VMEM((tm, in_p), jnp.float32)]
        kernel = _ffn_hidden_tiled_kernel
        dims = ("parallel", "arbitrary")

    vmem_limit = int(min(budget, max(32 * MiB, 2 * est)))

    out = pl.pallas_call(
        kernel,
        out_shape=jax.ShapeDtypeStruct((m_p, in_p), out_dtype),
        grid_spec=pltpu.PrefetchScalarGridSpec(
            num_scalar_prefetch=0,
            grid=grid,
            in_specs=in_specs,
            out_specs=out_specs,
            scratch_shapes=scratch_shapes,
        ),
        compiler_params=pltpu.CompilerParams(
            dimension_semantics=dims,
            vmem_limit_bytes=vmem_limit,
        ),
        cost_estimate=pl.CostEstimate(
            flops=flops, transcendentals=0, bytes_accessed=int(bytes_accessed)),
    )(xp, params.w1, params.b1, params.w2, params.b2)

    if m_p != M or in_p != in_dim:
        out = out[:M, :in_dim]
    return out


# --------------------------------------------------------------------------
# Demo / correctness check
# --------------------------------------------------------------------------
if __name__ == "__main__":
    # Shapes consistent with the module: batch of sequences of in_dim-feature
    # vectors -> hidden out_dim -> back to in_dim.
    batch, seq, in_dim, out_dim = 2, 8, 32, 64

    key = jax.random.PRNGKey(0)
    kx, kw1, kb1, kw2, kb2, kx2, kw3, kb3, kw4, kb4 = jax.random.split(key, 10)

    # nn.Linear-style uniform init; weights stored as [in_features, out_features].
    bound1 = 1.0 / jnp.sqrt(in_dim)
    bound2 = 1.0 / jnp.sqrt(out_dim)
    w1 = jax.random.uniform(kw1, (in_dim, out_dim), jnp.float32, -bound1, bound1)
    b1 = jax.random.uniform(kb1, (out_dim,), jnp.float32, -bound1, bound1)
    w2 = jax.random.uniform(kw2, (out_dim, in_dim), jnp.float32, -bound2, bound2)
    b2 = jax.random.uniform(kb2, (in_dim,), jnp.float32, -bound2, bound2)

    x = jax.random.normal(kx, (batch, seq, in_dim), jnp.float32)
    x2d = x.reshape(batch * seq, in_dim)  # flatten leading dims outside kernel

    ref = jnp.maximum(jnp.maximum(x2d @ w1 + b1, 0.0) @ w2 + b2, 0.0)

    # 1) f32-operand path (exact-ish).
    p_f32 = prepare_feedforward_params(w1, b1, w2, b2, compute_dtype=jnp.float32)
    out_f32 = jax.block_until_ready(feedforward(x2d, p_f32))
    assert jnp.allclose(out_f32, ref, atol=1e-5, rtol=1e-5), "f32 mismatch"

    # 2) Default path: bf16 matmul operands, f32 accumulation.
    p_bf16 = prepare_feedforward_params(w1, b1, w2, b2)
    out_bf16 = jax.block_until_ready(feedforward(x2d, p_bf16))
    assert jnp.allclose(out_bf16, ref, atol=1e-1, rtol=1e-1), "bf16 mismatch"
    _ = out_bf16.reshape(batch, seq, in_dim)  # restore [batch, seq, in_dim]

    # 3) Hidden-dim-tiled fallback (used when resident weights would not fit
    #    per-core VMEM, e.g. large layers on v7x) exercised on a wider hidden.
    in2, hid2 = 32, 384
    bo1 = 1.0 / jnp.sqrt(in2)
    bo2 = 1.0 / jnp.sqrt(hid2)
    w3 = jax.random.uniform(kw3, (in2, hid2), jnp.float32, -bo1, bo1)
    bb3 = jax.random.uniform(kb3, (hid2,), jnp.float32, -bo1, bo1)
    w4 = jax.random.uniform(kw4, (hid2, in2), jnp.float32, -bo2, bo2)
    bb4 = jax.random.uniform(kb4, (in2,), jnp.float32, -bo2, bo2)
    x2 = jax.random.normal(kx2, (batch * seq, in2), jnp.float32)
    ref2 = jnp.maximum(jnp.maximum(x2 @ w3 + bb3, 0.0) @ w4 + bb4, 0.0)
    p2 = prepare_feedforward_params(w3, bb3, w4, bb4)
    out2 = jax.block_until_ready(
        feedforward(x2, p2, force_hidden_tiling=True, hidden_block=128))
    assert jnp.allclose(out2, ref2, atol=1e-1, rtol=1e-1), "hidden-tiled mismatch"

    print("KERNEL_OK")
</pallas_src>

<mosaic_0001>
module attributes {stable_mosaic.version = 11 : i64} {
  func.func @_ffn_resident_kernel(%arg0: i32, %arg1: memref<16x128xf32, #tpu.memory_space<vmem>>, %arg2: memref<128x128xf32, #tpu.memory_space<vmem>>, %arg3: memref<1x128xf32, #tpu.memory_space<vmem>>, %arg4: memref<128x128xf32, #tpu.memory_space<vmem>>, %arg5: memref<1x128xf32, #tpu.memory_space<vmem>>, %arg6: memref<16x128xf32, #tpu.memory_space<vmem>>) attributes {dimension_semantics = [#tpu.dimension_semantics<parallel>], iteration_bounds = array<i64: 1>, scalar_prefetch = 0 : i64, scratch_operands = 0 : i64, tpu.core_type = #tpu.core_type<tc>, window_params = [{pipeline_mode = #tpu.pipeline_mode<double_buffered>, transform_indices = @transform_0, window_bounds = array<i64: 16, 128>}, {pipeline_mode = #tpu.pipeline_mode<synchronous>, transform_indices = @transform_1, window_bounds = array<i64: 128, 128>}, {pipeline_mode = #tpu.pipeline_mode<synchronous>, transform_indices = @transform_2, window_bounds = array<i64: 1, 128>}, {pipeline_mode = #tpu.pipeline_mode<synchronous>, transform_indices = @transform_3, window_bounds = array<i64: 128, 128>}, {pipeline_mode = #tpu.pipeline_mode<synchronous>, transform_indices = @transform_4, window_bounds = array<i64: 1, 128>}, {transform_indices = @transform_5, window_bounds = array<i64: 16, 128>}]} {
    %c0 = arith.constant 0 : index
    %c0_0 = arith.constant 0 : index
    %0 = vector.load %arg1[%c0, %c0_0] : memref<16x128xf32, #tpu.memory_space<vmem>>, vector<16x128xf32>
    %c0_1 = arith.constant 0 : index
    %c0_2 = arith.constant 0 : index
    %1 = vector.load %arg2[%c0_1, %c0_2] : memref<128x128xf32, #tpu.memory_space<vmem>>, vector<128x128xf32>
    %cst = arith.constant dense<0.000000e+00> : vector<16x128xf32>
    %2 = tpu.matmul %0, %1, %cst {dimension_numbers = #tpu.dot_dimension_numbers<[1], [0], [0], [1], [0, 0, 1, 1], [], []>} : vector<16x128xf32>, vector<128x128xf32>, vector<16x128xf32> -> vector<16x128xf32>
    %c0_3 = arith.constant 0 : index
    %c0_4 = arith.constant 0 : index
    %3 = vector.load %arg3[%c0_3, %c0_4] : memref<1x128xf32, #tpu.memory_space<vmem>>, vector<1x128xf32>
    %4 = vector.broadcast %3 : vector<1x128xf32> to vector<16x128xf32>
    %5 = arith.addf %2, %4 : vector<16x128xf32>
    %cst_5 = arith.constant 0.000000e+00 : f32
    %6 = vector.broadcast %cst_5 : f32 to vector<16x128xf32>
    %7 = arith.maximumf %5, %6 : vector<16x128xf32>
    %c0_6 = arith.constant 0 : index
    %c0_7 = arith.constant 0 : index
    %8 = vector.load %arg4[%c0_6, %c0_7] : memref<128x128xf32, #tpu.memory_space<vmem>>, vector<128x128xf32>
    %cst_8 = arith.constant dense<0.000000e+00> : vector<16x128xf32>
    %9 = tpu.matmul %7, %8, %cst_8 {dimension_numbers = #tpu.dot_dimension_numbers<[1], [0], [0], [1], [0, 0, 1, 1], [], []>} : vector<16x128xf32>, vector<128x128xf32>, vector<16x128xf32> -> vector<16x128xf32>
    %c0_9 = arith.constant 0 : index
    %c0_10 = arith.constant 0 : index
    %10 = vector.load %arg5[%c0_9, %c0_10] : memref<1x128xf32, #tpu.memory_space<vmem>>, vector<1x128xf32>
    %11 = vector.broadcast %10 : vector<1x128xf32> to vector<16x128xf32>
    %12 = arith.addf %9, %11 : vector<16x128xf32>
    %cst_11 = arith.constant 0.000000e+00 : f32
    %13 = vector.broadcast %cst_11 : f32 to vector<16x128xf32>
    %14 = arith.maximumf %12, %13 : vector<16x128xf32>
    %c0_12 = arith.constant 0 : index
    %c0_13 = arith.constant 0 : index
    %15 = vector.load %arg6[%c0_12, %c0_13] : memref<16x128xf32, #tpu.memory_space<vmem>>, vector<16x128xf32>
    tpu.vector_store %arg6[%c0_12, %c0_13], %14 {strides = array<i32>} : memref<16x128xf32, #tpu.memory_space<vmem>>, vector<16x128xf32>,
    return
  }
  func.func @transform_0(%arg0: i32) -> (i32, i32) {
    %c0_i32 = arith.constant 0 : i32
    %c0_i32_0 = arith.constant 0 : i32
    return %arg0, %c0_i32 : i32, i32
  }
  func.func @transform_1(%arg0: i32) -> (i32, i32) {
    %c0_i32 = arith.constant 0 : i32
    %c0_i32_0 = arith.constant 0 : i32
    %c0_i32_1 = arith.constant 0 : i32
    return %c0_i32, %c0_i32_0 : i32, i32
  }
  func.func @transform_2(%arg0: i32) -> (i32, i32) {
    %c0_i32 = arith.constant 0 : i32
    %c0_i32_0 = arith.constant 0 : i32
    %c0_i32_1 = arith.constant 0 : i32
    return %c0_i32, %c0_i32_0 : i32, i32
  }
  func.func @transform_3(%arg0: i32) -> (i32, i32) {
    %c0_i32 = arith.constant 0 : i32
    %c0_i32_0 = arith.constant 0 : i32
    %c0_i32_1 = arith.constant 0 : i32
    return %c0_i32, %c0_i32_0 : i32, i32
  }
  func.func @transform_4(%arg0: i32) -> (i32, i32) {
    %c0_i32 = arith.constant 0 : i32
    %c0_i32_0 = arith.constant 0 : i32
    %c0_i32_1 = arith.constant 0 : i32
    return %c0_i32, %c0_i32_0 : i32, i32
  }
  func.func @transform_5(%arg0: i32) -> (i32, i32) {
    %c0_i32 = arith.constant 0 : i32
    %c0_i32_0 = arith.constant 0 : i32
    return %arg0, %c0_i32 : i32, i32
  }
}

</mosaic_0001>

<llo_original>
// kernel: tpu_custom_call.1
$region0: #{tpu_custom_call.1}
  #allocation0 [shape = 'u32[]', space=smem, size = 0x4, offset = 0x4, fixed_abs, tag = 'smem constant byte address 0x4 - core index']
  #allocation1 [shape = 'u32[72,128]{1,0:T(1,128)}', space=vmem, size = 0x9000, scoped, tag = 'internal scratch']
  %s0 = inlined_call_operand.hbm [shape: f32[16,128], index: 0, kind: input, shape index: {}]
  %s1 = inlined_call_operand.hbm [shape: f32[128,128], index: 1, kind: input, shape index: {}]
  %s2 = inlined_call_operand.vmem [shape: f32[1,128], index: 2, kind: input, shape index: {}]
  %s3 = inlined_call_operand.hbm [shape: f32[128,128], index: 3, kind: input, shape index: {}]
  %s4 = inlined_call_operand.vmem [shape: f32[1,128], index: 4, kind: input, shape index: {}]
  %s5 = inlined_call_operand.hbm [shape: f32[16,128], index: 5, kind: output, shape index: {}]
  %s6 = sld [smem:[#allocation0]]
  $region42: #{tpu_custom_call.1} parent=0
    _
  %s8 = ssub.s32 1, %s6
  %s9 = scalar_select 0, %s8, %s6
  $region1: #{tpu_custom_call.1} parent=0
    #allocation2 [shape = 'u8[8192]{0}', space=vmem, size = 0x2000, scoped, tag = 'input window, operand 0, single buffered']
    #allocation3 [shape = 's32[1]{0}', space=sflag, size = 0x4, scoped, tag = 'scoped memory for tpu_custom_call.1']
    #allocation4 [shape = 's32[1]{0}', space=sflag, size = 0x4, scoped, tag = 'scoped memory for tpu_custom_call.1']
    #allocation5 [shape = 'u8[65536]{0}', space=vmem, size = 0x10000, scoped, tag = 'input window, operand 1, single buffered']
    #allocation6 [shape = 's32[1]{0}', space=sflag, size = 0x4, scoped, tag = 'scoped memory for tpu_custom_call.1']
    #allocation7 [shape = 'u8[65536]{0}', space=vmem, size = 0x10000, scoped, tag = 'input window, operand 3, single buffered']
    #allocation8 [shape = 'u8[8192]{0}', space=vmem, size = 0x2000, scoped, tag = 'output window, operand 0, single buffered']
    %10 = vsyncpa [#allocation3], 0
    %11 = vsyncpa [#allocation6], 0
    %12 = vsyncpa [#allocation4], 0
    // Predicated region
    $region2: #{tpu_custom_call.1} parent=1 // pred_check
      _
    $region3: #{tpu_custom_call.1} parent=1 // pred_check_branch
      %14 = sbr.rel (0) target = $region5
    $region4: #{tpu_custom_call.1} parent=1 // pred_region
      %16 = vsyncadd [#allocation3], 0
      %s17 = sshll.u32 %s0, 4
      %s18 = int_to_ptr.hbm [resolvable:$true] %s17
      %s19 = sshll.u32 [#allocation2], 4
      %s20 = int_to_ptr.vmem [resolvable:$true] %s19
      %25 = dma.hbm_to_vmem [thread:$0]  %s18, 256, %s20, [#allocation3], 128, 128, 8
    $region5: #{tpu_custom_call.1} parent=1 // pred_fallthru
      _
    // Predicated region
    $region6: #{tpu_custom_call.1} parent=1 // pred_check
      _
    $region7: #{tpu_custom_call.1} parent=1 // pred_check_branch
      %27 = sbr.rel (0) target = $region9
    $region8: #{tpu_custom_call.1} parent=1 // pred_region
      %29 = vsyncadd [#allocation6], 0
      %s30 = sshll.u32 %s1, 4
      %s31 = int_to_ptr.hbm [resolvable:$true] %s30
      %s32 = sshll.u32 [#allocation5], 4
      %s33 = int_to_ptr.vmem [resolvable:$true] %s32
      %38 = dma.hbm_to_vmem [thread:$0]  %s31, 2048, %s33, [#allocation6], 128, 128, 8
    $region9: #{tpu_custom_call.1} parent=1 // pred_fallthru
      _
    // Predicated region
    $region10: #{tpu_custom_call.1} parent=1 // pred_check
      _
    $region11: #{tpu_custom_call.1} parent=1 // pred_check_branch
      %40 = sbr.rel (0) target = $region13
    $region12: #{tpu_custom_call.1} parent=1 // pred_region
      _
    $region13: #{tpu_custom_call.1} parent=1 // pred_fallthru
      _
    // Predicated region
    $region14: #{tpu_custom_call.1} parent=1 // pred_check
      _
    $region15: #{tpu_custom_call.1} parent=1 // pred_check_branch
      %42 = sbr.rel (0) target = $region17
    $region16: #{tpu_custom_call.1} parent=1 // pred_region
      %44 = vsyncadd [#allocation6], 0
      %s45 = sshll.u32 %s3, 4
      %s46 = int_to_ptr.hbm [resolvable:$true] %s45
      %s47 = sshll.u32 [#allocation7], 4
      %s48 = int_to_ptr.vmem [resolvable:$true] %s47
      %53 = dma.hbm_to_vmem [thread:$0]  %s46, 2048, %s48, [#allocation6], 128, 128, 8
    $region17: #{tpu_custom_call.1} parent=1 // pred_fallthru
      _
    // Predicated region
    $region18: #{tpu_custom_call.1} parent=1 // pred_check
      _
    $region19: #{tpu_custom_call.1} parent=1 // pred_check_branch
      %55 = sbr.rel (0) target = $region21
    $region20: #{tpu_custom_call.1} parent=1 // pred_region
      _
    $region21: #{tpu_custom_call.1} parent=1 // pred_fallthru
      _
    // Predicated region
    $region22: #{tpu_custom_call.1} parent=1 // pred_check
      _
    $region23: #{tpu_custom_call.1} parent=1 // pred_check_branch
      %57 = sbr.rel (0) target = $region25
    $region24: #{tpu_custom_call.1} parent=1 // pred_region
      %59 = dma.done [#allocation3], 256
    $region25: #{tpu_custom_call.1} parent=1 // pred_fallthru
      _
    // Predicated region
    $region26: #{tpu_custom_call.1} parent=1 // pred_check
      _
    $region27: #{tpu_custom_call.1} parent=1 // pred_check_branch
      %61 = sbr.rel (0) target = $region29
    $region28: #{tpu_custom_call.1} parent=1 // pred_region
      %63 = dma.done [#allocation6], 2048
    $region29: #{tpu_custom_call.1} parent=1 // pred_fallthru
      _
    // Predicated region
    $region30: #{tpu_custom_call.1} parent=1 // pred_check
      _
    $region31: #{tpu_custom_call.1} parent=1 // pred_check_branch
      %65 = sbr.rel (0) target = $region33
    $region32: #{tpu_custom_call.1} parent=1 // pred_region
      %67 = dma.done [#allocation6], 2048
    $region33: #{tpu_custom_call.1} parent=1 // pred_fallthru
      _
    %v68 = vld [vmem:[#allocation2] sm:$0xff]
    %v69 = vld [vmem:[#allocation2 + $0x8] sm:$0xff]
    %v70 = vld [vmem:[#allocation5] sm:$0xff]
    %v71 = vld [vmem:[#allocation5 + $0x8] sm:$0xff]
    %v72 = vld [vmem:[#allocation5 + $0x10] sm:$0xff]
    %v73 = vld [vmem:[#allocation5 + $0x18] sm:$0xff]
    %v74 = vld [vmem:[#allocation5 + $0x20] sm:$0xff]
    %v75 = vld [vmem:[#allocation5 + $0x28] sm:$0xff]
    %v76 = vld [vmem:[#allocation5 + $0x30] sm:$0xff]
    %v77 = vld [vmem:[#allocation5 + $0x38] sm:$0xff]
    %v78 = vld [vmem:[#allocation5 + $0x40] sm:$0xff]
    %v79 = vld [vmem:[#allocation5 + $0x48] sm:$0xff]
    %v80 = vld [vmem:[#allocation5 + $0x50] sm:$0xff]
    %v81 = vld [vmem:[#allocation5 + $0x58] sm:$0xff]
    %v82 = vld [vmem:[#allocation5 + $0x60] sm:$0xff]
    %v83 = vld [vmem:[#allocation5 + $0x68] sm:$0xff]
    %v84 = vld [vmem:[#allocation5 + $0x70] sm:$0xff]
    %v85 = vld [vmem:[#allocation5 + $0x78] sm:$0xff]
    %v86 = vld [vmem:[%s2] sm:$0x1]
    %v88 = vperm.slane %v86, 0
    %90 = vmatpush.msra.mxu0 %v85
    %91 = vmatpush.msra.mxu0 %v84
    %92 = vmatpush.msra.mxu0 %v83
    %93 = vmatpush.msra.mxu0 %v82
    %94 = vmatpush.msra.mxu0 %v81
    %95 = vmatpush.msra.mxu0 %v80
    %96 = vmatpush.msra.mxu0 %v79
    %97 = vmatpush.msra.mxu0 %v78
    %98 = vmatpush.msra.mxu0 %v77
    %99 = vmatpush.msra.mxu0 %v76
    %100 = vmatpush.msra.mxu0 %v75
    %101 = vmatpush.msra.mxu0 %v74
    %102 = vmatpush.msra.mxu0 %v73
    %103 = vmatpush.msra.mxu0 %v72
    %104 = vmatpush.msra.mxu0 %v71
    %105 = vmatpush.msra.mxu0 %v70
    %106 = vmatmul.f32.gmra.mxu0 %v68
    %v107 = vpop.f32.mrf.mxu0
    %v108 = vadd.f32 %v88, %v107
    %109 = vmatmul.f32.gmra.mxu0 %v69
    %v110 = vpop.f32.mrf.mxu0
    %v111 = vadd.f32 %v88, %v110
    %112 = vdwg.mxu0
    %v113 = vmax.f32 %v108, 0.0
    %v114 = vmax.f32 %v111, 0.0
    %v115 = vld [vmem:[#allocation7] sm:$0xff]
    %v116 = vld [vmem:[#allocation7 + $0x8] sm:$0xff]
    %v117 = vld [vmem:[#allocation7 + $0x10] sm:$0xff]
    %v118 = vld [vmem:[#allocation7 + $0x18] sm:$0xff]
    %v119 = vld [vmem:[#allocation7 + $0x20] sm:$0xff]
    %v120 = vld [vmem:[#allocation7 + $0x28] sm:$0xff]
    %v121 = vld [vmem:[#allocation7 + $0x30] sm:$0xff]
    %v122 = vld [vmem:[#allocation7 + $0x38] sm:$0xff]
    %v123 = vld [vmem:[#allocation7 + $0x40] sm:$0xff]
    %v124 = vld [vmem:[#allocation7 + $0x48] sm:$0xff]
    %v125 = vld [vmem:[#allocation7 + $0x50] sm:$0xff]
    %v126 = vld [vmem:[#allocation7 + $0x58] sm:$0xff]
    %v127 = vld [vmem:[#allocation7 + $0x60] sm:$0xff]
    %v128 = vld [vmem:[#allocation7 + $0x68] sm:$0xff]
    %v129 = vld [vmem:[#allocation7 + $0x70] sm:$0xff]
    %v130 = vld [vmem:[#allocation7 + $0x78] sm:$0xff]
    %v131 = vld [vmem:[%s4] sm:$0x1]
    %v133 = vperm.slane %v131, 0
    %135 = vmatpush.msra.mxu0 %v130
    %136 = vmatpush.msra.mxu0 %v129
    %137 = vmatpush.msra.mxu0 %v128
    %138 = vmatpush.msra.mxu0 %v127
    %139 = vmatpush.msra.mxu0 %v126
    %140 = vmatpush.msra.mxu0 %v125
    %141 = vmatpush.msra.mxu0 %v124
    %142 = vmatpush.msra.mxu0 %v123
    %143 = vmatpush.msra.mxu0 %v122
    %144 = vmatpush.msra.mxu0 %v121
    %145 = vmatpush.msra.mxu0 %v120
    %146 = vmatpush.msra.mxu0 %v119
    %147 = vmatpush.msra.mxu0 %v118
    %148 = vmatpush.msra.mxu0 %v117
    %149 = vmatpush.msra.mxu0 %v116
    %150 = vmatpush.msra.mxu0 %v115
    %151 = vmatmul.f32.gmra.mxu0 %v113
    %v152 = vpop.f32.mrf.mxu0
    %v153 = vadd.f32 %v133, %v152
    %154 = vmatmul.f32.gmra.mxu0 %v114
    %v155 = vpop.f32.mrf.mxu0
    %v156 = vadd.f32 %v133, %v155
    %157 = vdwg.mxu0
    %v158 = vmax.f32 %v153, 0.0
    %v159 = vmax.f32 %v156, 0.0
    %160 = vst [vmem:[#allocation8] sm:$0xff] %v158
    %161 = vst [vmem:[#allocation8 + $0x8] sm:$0xff] %v159
    // Predicated region
    $region34: #{tpu_custom_call.1} parent=1 // pred_check
      _
    $region35: #{tpu_custom_call.1} parent=1 // pred_check_branch
      %163 = sbr.rel (0) target = $region37
    $region36: #{tpu_custom_call.1} parent=1 // pred_region
      %165 = vsyncadd [#allocation4], 0
      %s166 = sshll.u32 [#allocation8], 4
      %s167 = int_to_ptr.vmem [resolvable:$true] %s166
      %s168 = sshll.u32 %s5, 4
      %s169 = int_to_ptr.hbm [resolvable:$true] %s168
      %174 = dma.vmem_to_hbm [thread:$0]  %s167, 256, %s169, [#allocation4], 128, 128, 8
    $region37: #{tpu_custom_call.1} parent=1 // pred_fallthru
      _
    // Predicated region
    $region38: #{tpu_custom_call.1} parent=1 // pred_check
      _
    $region39: #{tpu_custom_call.1} parent=1 // pred_check_branch
      %176 = sbr.rel (0) target = $region41
    $region40: #{tpu_custom_call.1} parent=1 // pred_region
      %178 = dma.done [#allocation4], 256
    $region41: #{tpu_custom_call.1} parent=1 // pred_fallthru
      _
    %179 = vsyncpa [#allocation3], 1
    %180 = vsyncpa [#allocation6], 1
    %181 = vsyncpa [#allocation4], 1

</llo_original>
